<compile_context>
chip_gen: v6e
topology: v6e:2x2x1
jax: 0.10.0
libtpu: 0.0.40
codegen_flags: <defaults>
</compile_context>

<pallas_src>
import jax
import jax.numpy as jnp
from jax.experimental import pallas as pl
from jax.experimental.pallas import tpu as pltpu


def _round_up(x, m):
    return ((x + m - 1) // m) * m


def _vmem_budgets():
    """(vmem_limit_bytes, tile_budget_bytes), branched on the chip's physical VMEM."""
    cap = None
    try:
        cap = int(pltpu.get_tpu_info().vmem_capacity_bytes)
    except Exception:
        cap = None  # info query failed -> assume the smallest (v7x-like) VMEM
    if cap is None or cap <= 80 * (1 << 20):      # v7x: 64 MiB per TensorCore
        return 48 * (1 << 20), 28 * (1 << 20)
    return 104 * (1 << 20), 80 * (1 << 20)        # v5e / v6e: 128 MiB


def _choose_tk(k, hp, tile_budget):
    """K-tile: keep full K unless the (double-buffered) weight tile would eat the budget."""
    if 4 * k * hp <= tile_budget // 3:
        return k
    best = None
    for tk in range(128, k, 128):
        if k % tk == 0 and 4 * tk * hp <= tile_budget // 3:
            best = tk
    return best if best is not None else k


def _choose_tm(n, tk, hp, out_bytes, tile_budget):
    """Row tile: largest divisor of N (multiple of 8, or N itself) fitting the VMEM budget.

    Prefers an even grid-step count (balances v7x's two TensorCores) as long as that costs
    at most 2x in tile size.  Returns (tm, n_padded); padding only if N has no usable divisor.
    """
    # Per-step VMEM: 2x bf16 X tile, 2x bf16 W tile, 2x bf16 PE tile, 2x out tile, 1x f32 acc.
    per_row = 4 * tk + 4 * hp + 2 * out_bytes * hp + 4 * hp
    fixed = 4 * tk * hp
    max_rows = max((tile_budget - fixed) // per_row, 8)

    divs = []
    i = 1
    while i * i <= n:
        if n % i == 0:
            for d in (i, n // i):
                if d <= max_rows and (d % 8 == 0 or d == n):
                    divs.append(d)
        i += 1
    if divs:
        best = max(divs)
        even = [d for d in divs if (n // d) % 2 == 0]
        if even:
            best_even = max(even)
            if 2 * best_even >= best:
                return best_even, n
        return best, n
    # Ragged fallback: pad N up to a multiple of an 8-aligned tile.
    tm = max((min(max_rows, n) // 8) * 8, 8)
    return tm, _round_up(n, tm)


def _patch_embed_kernel(x_ref, w_ref, pe_ref, o_ref, acc_ref):
    """Fused patch projection: bf16 MXU matmul, f32 accumulation over K, + (bias+pos-embed)."""
    kk = pl.program_id(1)

    @pl.when(kk == 0)
    def _():
        acc_ref[...] = jnp.zeros_like(acc_ref)

    acc_ref[...] += jnp.dot(x_ref[...], w_ref[...], preferred_element_type=jnp.float32)

    @pl.when(kk == pl.num_programs(1) - 1)
    def _():
        o_ref[...] = (acc_ref[...] + pe_ref[...].astype(jnp.float32)).astype(o_ref.dtype)


def patch_embed_matmul(x, w, pe, hidden, out_dtype=jnp.bfloat16):
    """x:(N,K) bf16, w:(K,Hp) bf16, pe:(N,Hp) bf16 (bias already folded in).

    Returns (N, hidden) in out_dtype = x @ w + pe with f32 accumulation.
    """
    n, k = x.shape
    hp = w.shape[1]
    vmem_limit, tile_budget = _vmem_budgets()
    out_bytes = jnp.dtype(out_dtype).itemsize

    tk = _choose_tk(k, hp, tile_budget)
    tm, n_pad = _choose_tm(n, tk, hp, out_bytes, tile_budget)
    if n_pad != n:
        x = jnp.pad(x, ((0, n_pad - n), (0, 0)))
        pe = jnp.pad(pe, ((0, n_pad - n), (0, 0)))

    out = pl.pallas_call(
        _patch_embed_kernel,
        out_shape=jax.ShapeDtypeStruct((n_pad, hp), out_dtype),
        grid_spec=pltpu.PrefetchScalarGridSpec(
            num_scalar_prefetch=0,
            grid=(n_pad // tm, k // tk),
            in_specs=[
                pl.BlockSpec((tm, tk), lambda i, kk: (i, kk)),   # patch-matrix tile
                pl.BlockSpec((tk, hp), lambda i, kk: (kk, 0)),   # weight tile (grid-invariant in i)
                pl.BlockSpec((tm, hp), lambda i, kk: (i, 0)),    # pos-embed(+bias) tile
            ],
            out_specs=pl.BlockSpec((tm, hp), lambda i, kk: (i, 0)),
            scratch_shapes=[pltpu.VMEM((tm, hp), jnp.float32)],
        ),
        compiler_params=pltpu.CompilerParams(
            dimension_semantics=("parallel", "arbitrary"),
            vmem_limit_bytes=vmem_limit,
        ),
    )(x, w, pe)
    return out[:n, :hidden]


def _extract_patches(image, patch_size):
    """image: (C, D, H, W) -> (N_patches, C*p0*p1*p2) bf16; column order (C, p0, p1, p2) matches
    PyTorch Conv3d weight flattening; rows are (d', h', w') raster order."""
    # TODO(synk): fully fusing this 7-D transpose into the kernel (in-kernel relayout of the raw
    # image tile) would halve the X HBM stream again, but the required small-trailing-dim permute
    # does not lower robustly in Mosaic; kept as a single host-side XLA transpose in bf16.
    c, d, h, w = image.shape
    p0, p1, p2 = patch_size
    x = image.astype(jnp.bfloat16)                # cast BEFORE the transpose -> half the traffic
    x = x.reshape(c, d // p0, p0, h // p1, p1, w // p2, p2)
    x = x.transpose(1, 3, 5, 0, 2, 4, 6)          # (D', H', W', C, p0, p1, p2)
    n = (d // p0) * (h // p1) * (w // p2)
    return x.reshape(n, c * p0 * p1 * p2)


def _pos_embed_plus_bias(pos_embed, bias, out_shape, hp):
    """pos_embed (1, hidden, pd, ph, pw), bias (hidden,) -> (N_patches, hp) bf16 with bias folded in."""
    # TODO(synk): jax.image.resize trilinear is half-pixel (align_corners=False); verify against
    # spadop.resample's convention before comparing with the torch module.
    # TODO(synk): the resampling itself could be done per row-tile inside the kernel (pos_embed is
    # only ~100 KB) to remove this (N, hidden) HBM stream entirely.
    hidden = pos_embed.shape[1]
    pe = jax.image.resize(pos_embed, (1, hidden) + tuple(out_shape), method="trilinear")[0]
    pe = (pe + bias[:, None, None, None]).astype(jnp.bfloat16)   # fold conv bias, then bf16
    pe = jnp.transpose(pe, (1, 2, 3, 0)).reshape(-1, hidden)     # (N, hidden)
    if hp != hidden:
        pe = jnp.pad(pe, ((0, 0), (0, hp - hidden)))
    return pe


def patch_embedding_block_forward(image_list, patch_size_list, proj_weight, proj_bias,
                                  pos_embed, out_dtype=jnp.bfloat16):
    """Mirrors PatchEmbeddingBlock.forward (eval mode).

    proj_weight: (hidden, C, p0, p1, p2)   Conv3d weight layout
    proj_bias:   (hidden,)
    pos_embed:   (1, hidden, *pos_embed_shape)
    Returns (x, shape_list, seg_ids) with x: (1, total_seq, hidden) in out_dtype and
    seg_ids: (total_seq,) int32 per-token image index (block-diagonal mask representation).
    """
    hidden = proj_weight.shape[0]
    kernel_size = tuple(proj_weight.shape[2:])
    hp = _round_up(hidden, 128)                       # lane-dense output / weight / PE columns

    w_mat = proj_weight.reshape(hidden, -1).T.astype(jnp.bfloat16)   # (K, hidden)
    if hp != hidden:
        w_mat = jnp.pad(w_mat, ((0, 0), (0, hp - hidden)))

    outs, shape_list, seg_ids = [], [], []
    for idx, (image, ps) in enumerate(zip(image_list, patch_size_list)):
        ps = tuple(ps)
        if ps != kernel_size:
            # TODO(synk): resample.Downsample resamples its conv kernel for a mismatching
            # per-image patch_size; only the native kernel_size path is implemented here.
            raise NotImplementedError("per-image patch_size != proj kernel size is not supported")
        _, d, h, w = image.shape
        out_shape = tuple(s // p for s, p in zip((d, h, w), ps))
        x_i = _extract_patches(image, ps)                              # (N_i, K)  bf16
        pe_i = _pos_embed_plus_bias(pos_embed, proj_bias, out_shape, hp)  # (N_i, hp) bf16
        outs.append(patch_embed_matmul(x_i, w_mat, pe_i, hidden, out_dtype))
        shape_list.append(out_shape)
        seg_ids.append(jnp.full((x_i.shape[0],), idx, dtype=jnp.int32))

    x = jnp.concatenate(outs, axis=0)[None]           # (1, total_seq, hidden)
    seg = jnp.concatenate(seg_ids, axis=0)            # (total_seq,)
    # TODO(synk): xformers BlockDiagonalMask has no JAX/Pallas equivalent; return O(total)
    # segment ids instead of a dense O(total^2) boolean mask — downstream attention should
    # mask with seg[:, None] == seg[None, :] (or its blockwise equivalent) inside its own kernel.
    # dropout: identity at inference time.
    return x, shape_list, seg


if __name__ == "__main__":
    key = jax.random.PRNGKey(0)
    k_w, k_b, k_pe, k_im1, k_im2 = jax.random.split(key, 5)

    in_channels = 4
    hidden_size = 32
    num_heads = 4                      # hidden_size % num_heads == 0 (module validation)
    patch_size = (2, 2, 2)
    pos_embed_shape = (4, 4, 4)
    assert hidden_size % num_heads == 0

    # deterministic synthetic parameters (module init shapes)
    proj_weight = 0.02 * jax.random.normal(
        k_w, (hidden_size, in_channels) + patch_size, dtype=jnp.float32)
    proj_bias = 0.01 * jax.random.normal(k_b, (hidden_size,), dtype=jnp.float32)
    # module inits position_embeddings to zeros; use small values so the add is exercised
    pos_embed = 0.02 * jax.random.normal(
        k_pe, (1, hidden_size) + pos_embed_shape, dtype=jnp.float32)

    # two images with different spatial extents (list-of-tensors forward semantics)
    image1 = jax.random.normal(k_im1, (in_channels, 8, 8, 8), dtype=jnp.float32)  # -> (4,4,4), 64 tokens
    image2 = jax.random.normal(k_im2, (in_channels, 4, 8, 8), dtype=jnp.float32)  # -> (2,4,4), 32 tokens
    image_list = [image1, image2]
    patch_size_list = [patch_size, patch_size]

    x, shape_list, seg = patch_embedding_block_forward(
        image_list, patch_size_list, proj_weight, proj_bias, pos_embed)
    jax.block_until_ready(x)

    # plain-JAX reference with the same numerics (bf16 MXU inputs, f32 accumulation, bf16 output)
    w_mat_ref = proj_weight.reshape(hidden_size, -1).T.astype(jnp.bfloat16)
    refs = []
    for image, ps in zip(image_list, patch_size_list):
        out_shape = tuple(s // p for s, p in zip(image.shape[1:], ps))
        xm = _extract_patches(image, ps)                                   # bf16
        acc = jnp.dot(xm, w_mat_ref, preferred_element_type=jnp.float32)   # f32
        pe = _pos_embed_plus_bias(pos_embed, proj_bias, out_shape, hidden_size)  # bf16, bias folded
        refs.append((acc + pe.astype(jnp.float32)).astype(jnp.bfloat16))
    ref_x = jnp.concatenate(refs, axis=0)[None]

    total = 64 + 32
    assert x.shape == (1, total, hidden_size), x.shape
    assert x.dtype == jnp.bfloat16, x.dtype
    assert shape_list == [(4, 4, 4), (2, 4, 4)], shape_list
    assert seg.shape == (total,) and seg.dtype == jnp.int32

    # block-diagonal mask semantics recovered from the segment ids
    attn_mask = seg[:, None] == seg[None, :]
    assert bool(attn_mask[0, 63]) and (not bool(attn_mask[0, 64])) and bool(attn_mask[64, 95])

    assert jnp.allclose(x.astype(jnp.float32), ref_x.astype(jnp.float32), atol=1e-2, rtol=1e-2)

    print("KERNEL_OK")
</pallas_src>

<mosaic_0001>
module attributes {stable_mosaic.version = 11 : i64} {
  func.func @_patch_embed_kernel(%arg0: i32, %arg1: i32, %arg2: memref<32x32xbf16, #tpu.memory_space<vmem>>, %arg3: memref<32x128xbf16, #tpu.memory_space<vmem>>, %arg4: memref<32x128xbf16, #tpu.memory_space<vmem>>, %arg5: memref<32x128xbf16, #tpu.memory_space<vmem>>, %arg6: memref<32x128xf32, #tpu.memory_space<vmem>>) attributes {dimension_semantics = [#tpu.dimension_semantics<parallel>, #tpu.dimension_semantics<arbitrary>], iteration_bounds = array<i64: 2, 1>, scalar_prefetch = 0 : i64, scratch_operands = 1 : i64, tpu.core_type = #tpu.core_type<tc>, window_params = [{transform_indices = @transform_0, window_bounds = array<i64: 32, 32>}, {transform_indices = @transform_1, window_bounds = array<i64: 32, 128>}, {transform_indices = @transform_2, window_bounds = array<i64: 32, 128>}, {transform_indices = @transform_3, window_bounds = array<i64: 32, 128>}]} {
    %c0_i32 = arith.constant 0 : i32
    %0 = arith.cmpi eq, %arg1, %c0_i32 : i32
    %1 = arith.extui %0 : i1 to i32
    %c0_i32_0 = arith.constant 0 : i32
    %2 = arith.cmpi ne, %1, %c0_i32_0 : i32
    scf.if %2 {
      %cst_10 = arith.constant 0.000000e+00 : f32
      %12 = vector.broadcast %cst_10 : f32 to vector<32x128xf32>
      %c0_11 = arith.constant 0 : index
      %c0_12 = arith.constant 0 : index
      %13 = vector.load %arg6[%c0_11, %c0_12] : memref<32x128xf32, #tpu.memory_space<vmem>>, vector<32x128xf32>
      tpu.vector_store %arg6[%c0_11, %c0_12], %12 {strides = array<i32>} : memref<32x128xf32, #tpu.memory_space<vmem>>, vector<32x128xf32>,
    } else {
    }
    %c0 = arith.constant 0 : index
    %c0_1 = arith.constant 0 : index
    %3 = vector.load %arg6[%c0, %c0_1] : memref<32x128xf32, #tpu.memory_space<vmem>>, vector<32x128xf32>
    %c0_2 = arith.constant 0 : index
    %c0_3 = arith.constant 0 : index
    %4 = vector.load %arg2[%c0_2, %c0_3] : memref<32x32xbf16, #tpu.memory_space<vmem>>, vector<32x32xbf16>
    %c0_4 = arith.constant 0 : index
    %c0_5 = arith.constant 0 : index
    %5 = vector.load %arg3[%c0_4, %c0_5] : memref<32x128xbf16, #tpu.memory_space<vmem>>, vector<32x128xbf16>
    %cst = arith.constant dense<0.000000e+00> : vector<32x128xf32>
    %6 = tpu.matmul %4, %5, %cst {dimension_numbers = #tpu.dot_dimension_numbers<[1], [0], [0], [1], [0, 0, 1, 1], [], []>} : vector<32x32xbf16>, vector<32x128xbf16>, vector<32x128xf32> -> vector<32x128xf32>
    %7 = arith.addf %3, %6 : vector<32x128xf32>
    %c0_6 = arith.constant 0 : index
    %c0_7 = arith.constant 0 : index
    %8 = vector.load %arg6[%c0_6, %c0_7] : memref<32x128xf32, #tpu.memory_space<vmem>>, vector<32x128xf32>
    tpu.vector_store %arg6[%c0_6, %c0_7], %7 {strides = array<i32>} : memref<32x128xf32, #tpu.memory_space<vmem>>, vector<32x128xf32>,
    %c0_i32_8 = arith.constant 0 : i32
    %9 = arith.cmpi eq, %arg1, %c0_i32_8 : i32
    %10 = arith.extui %9 : i1 to i32
    %c0_i32_9 = arith.constant 0 : i32
    %11 = arith.cmpi ne, %10, %c0_i32_9 : i32
    scf.if %11 {
      %c0_10 = arith.constant 0 : index
      %c0_11 = arith.constant 0 : index
      %12 = vector.load %arg6[%c0_10, %c0_11] : memref<32x128xf32, #tpu.memory_space<vmem>>, vector<32x128xf32>
      %c0_12 = arith.constant 0 : index
      %c0_13 = arith.constant 0 : index
      %13 = vector.load %arg4[%c0_12, %c0_13] : memref<32x128xbf16, #tpu.memory_space<vmem>>, vector<32x128xbf16>
      %14 = arith.extf %13 : vector<32x128xbf16> to vector<32x128xf32>
      %15 = arith.addf %12, %14 : vector<32x128xf32>
      %16 = arith.truncf %15 : vector<32x128xf32> to vector<32x128xbf16>
      %c0_14 = arith.constant 0 : index
      %c0_15 = arith.constant 0 : index
      %17 = vector.load %arg5[%c0_14, %c0_15] : memref<32x128xbf16, #tpu.memory_space<vmem>>, vector<32x128xbf16>
      tpu.vector_store %arg5[%c0_14, %c0_15], %16 {strides = array<i32>} : memref<32x128xbf16, #tpu.memory_space<vmem>>, vector<32x128xbf16>,
    } else {
    }
    return
  }
  func.func @transform_0(%arg0: i32, %arg1: i32) -> (i32, i32) {
    %c0_i32 = arith.constant 0 : i32
    return %arg0, %arg1 : i32, i32
  }
  func.func @transform_1(%arg0: i32, %arg1: i32) -> (i32, i32) {
    %c0_i32 = arith.constant 0 : i32
    %c0_i32_0 = arith.constant 0 : i32
    return %arg1, %c0_i32 : i32, i32
  }
  func.func @transform_2(%arg0: i32, %arg1: i32) -> (i32, i32) {
    %c0_i32 = arith.constant 0 : i32
    %c0_i32_0 = arith.constant 0 : i32
    return %arg0, %c0_i32 : i32, i32
  }
  func.func @transform_3(%arg0: i32, %arg1: i32) -> (i32, i32) {
    %c0_i32 = arith.constant 0 : i32
    %c0_i32_0 = arith.constant 0 : i32
    return %arg0, %c0_i32 : i32, i32
  }
}

</mosaic_0001>

<llo_original>
// kernel: tpu_custom_call.1
$region0: #{tpu_custom_call.1}
  #allocation0 [shape = 'u32[]', space=smem, size = 0x4, offset = 0x4, fixed_abs, tag = 'smem constant byte address 0x4 - core index']
  #allocation1 [shape = 'u32[144,128]{1,0:T(1,128)}', space=vmem, size = 0x12000, scoped, tag = 'internal scratch']
  #allocation2 [shape = 'f32[32,128]{1,0:T(8,128)}', space=vmem, size = 0x4000, scoped, tag = 'scratch operand']
  %s0 = inlined_call_operand.vmem [shape: bf16[64,32], index: 0, kind: input, shape index: {}]
  %s1 = inlined_call_operand.vmem [shape: bf16[32,128], index: 1, kind: input, shape index: {}]
  %s2 = inlined_call_operand.vmem [shape: bf16[64,128], index: 2, kind: input, shape index: {}]
  %s3 = inlined_call_operand.hbm [shape: bf16[64,128], index: 3, kind: output, shape index: {}]
  %s4 = sld [smem:[#allocation0]]
  $region53: #{tpu_custom_call.1} parent=0
    _
  %s6 = ssub.s32 1, %s4
  %s7 = scalar_select 0, %s6, %s4
  $region1: #{tpu_custom_call.1} parent=0
    #allocation3 [shape = 'u8[16384]{0}', space=vmem, size = 0x4000, scoped, tag = 'output window, operand 0']
    #allocation4 [shape = 's32[2]{0}', space=sflag, size = 0x8, scoped, tag = 'scoped memory for tpu_custom_call.1']
    %8 = vsyncpa [#allocation4], 0
    %s9 = scalar_lea.sflag [#allocation4], 1
    %10 = vsyncpa %s9, 0
    loop: start=0, step=1, limit=4
    $region2: #{tpu_custom_call.1} parent=1 // loop_pre_header
      _
    $region3: #{tpu_custom_call.1} parent=1 // loop_header
      %s12 = sphi 0, %s16
      %p13 = scmp.ge.s32.totalorder %s12, 4
      %s19 = sphi 0, %s31
      %s20 = sphi 0, %s27
      %s21 = sphi 0, %s19
      %s22 = sphi 0, %s20
      %s23 = sphi 0, %s21
      %s24 = sphi 0, %s22
      %s36 = sphi 0, %s38
      %s39 = sphi 0, %s36
      %s40 = sphi 0, %s39
      %s56 = sphi 0, %s40
      %s62 = sphi 0, %s64
      %s65 = sphi 0, %s62
      %s66 = sphi 0, %s65
      %s82 = sphi 0, %s66
      %s88 = sphi 0, %s90
      %s91 = sphi 0, %s88
      %s92 = sphi 0, %s91
      %s108 = sphi 0, %s92
      %s114 = sphi 0, %s116
      %s117 = sphi 0, %s114
      %s118 = sphi 0, %s117
      %s134 = sphi 0, %s118
    $region4: #{tpu_custom_call.1} parent=1 // loop_header_branch
      %15 = sbr.rel (%p13) target = $region8
    $region5: #{tpu_custom_call.1} parent=1 // loop_body
      %s17 = ssub.s32 %s12, 1
      %s18 = ssub.s32 %s12, 2
      %s25 = sadd.s32 1, %s20
      %p26 = scmp.ge.s32.totalorder %s25, 1
      %s27 = scalar_select %p26, 0, %s25
      %s28 = sadd.s32 1, %s19
      %s29 = scalar_select %p26, %s28, %s19
      %p30 = scmp.ge.s32.totalorder %s29, 2
      %s31 = scalar_select %p30, 0, %s29
      %s32 = ssub.s32 %s19, %s31
      %s33 = ssub.s32 %s20, %s27
      %s34 = sor.u32 %s32, %s33
      %p35 = scmp.eq.s32.totalorder %s34, 0
      %s37 = sadd.s32 %s36, 1
      %s38 = scalar_select %p35, %s36, %s37
      %p41 = pneg %p35
      %p42 = scmp.eq.s32.totalorder %s12, 1
      %p43 = por %p41, %p42
      %p44 = scmp.ne.s32.totalorder %s36, %s39
      %p45 = scmp.eq.s32.totalorder %s12, 0
      %p46 = por %p44, %p45
      %p47 = scmp.ne.s32.totalorder %s36, %s39
      %p48 = scmp.eq.s32.totalorder %s17, 1
      %p49 = por %p47, %p48
      %p50 = scmp.ne.s32.totalorder %s39, %s40
      %p51 = scmp.eq.s32.totalorder %s17, 0
      %p52 = por %p50, %p51
      %p53 = scmp.ne.s32.totalorder %s39, %s40
      %p54 = scmp.eq.s32.totalorder %s18, 1
      %p55 = por %p53, %p54
      %p57 = scmp.ne.s32.totalorder %s40, %s56
      %p58 = scmp.eq.s32.totalorder %s18, 0
      %p59 = por %p57, %p58
      %s60 = ssub.s32 %s20, %s27
      %p61 = scmp.eq.s32.totalorder %s60, 0
      %s63 = sadd.s32 %s62, 1
      %s64 = scalar_select %p61, %s62, %s63
      %p67 = pneg %p61
      %p68 = scmp.eq.s32.totalorder %s12, 1
      %p69 = por %p67, %p68
      %p70 = scmp.ne.s32.totalorder %s62, %s65
      %p71 = scmp.eq.s32.totalorder %s12, 0
      %p72 = por %p70, %p71
      %p73 = scmp.ne.s32.totalorder %s62, %s65
      %p74 = scmp.eq.s32.totalorder %s17, 1
      %p75 = por %p73, %p74
      %p76 = scmp.ne.s32.totalorder %s65, %s66
      %p77 = scmp.eq.s32.totalorder %s17, 0
      %p78 = por %p76, %p77
      %p79 = scmp.ne.s32.totalorder %s65, %s66
      %p80 = scmp.eq.s32.totalorder %s18, 1
      %p81 = por %p79, %p80
      %p83 = scmp.ne.s32.totalorder %s66, %s82
      %p84 = scmp.eq.s32.totalorder %s18, 0
      %p85 = por %p83, %p84
      %s86 = ssub.s32 %s19, %s31
      %p87 = scmp.eq.s32.totalorder %s86, 0
      %s89 = sadd.s32 %s88, 1
      %s90 = scalar_select %p87, %s88, %s89
      %p93 = pneg %p87
      %p94 = scmp.eq.s32.totalorder %s12, 1
      %p95 = por %p93, %p94
      %p96 = scmp.ne.s32.totalorder %s88, %s91
      %p97 = scmp.eq.s32.totalorder %s12, 0
      %p98 = por %p96, %p97
      %p99 = scmp.ne.s32.totalorder %s88, %s91
      %p100 = scmp.eq.s32.totalorder %s17, 1
      %p101 = por %p99, %p100
      %p102 = scmp.ne.s32.totalorder %s91, %s92
      %p103 = scmp.eq.s32.totalorder %s17, 0
      %p104 = por %p102, %p103
      %p105 = scmp.ne.s32.totalorder %s91, %s92
      %p106 = scmp.eq.s32.totalorder %s18, 1
      %p107 = por %p105, %p106
      %p109 = scmp.ne.s32.totalorder %s92, %s108
      %p110 = scmp.eq.s32.totalorder %s18, 0
      %p111 = por %p109, %p110
      %s112 = ssub.s32 %s19, %s31
      %p113 = scmp.eq.s32.totalorder %s112, 0
      %s115 = sadd.s32 %s114, 1
      %s116 = scalar_select %p113, %s114, %s115
      %p119 = pneg %p113
      %p120 = scmp.eq.s32.totalorder %s12, 1
      %p121 = por %p119, %p120
      %p122 = scmp.ne.s32.totalorder %s114, %s117
      %p123 = scmp.eq.s32.totalorder %s12, 0
      %p124 = por %p122, %p123
      %p125 = scmp.ne.s32.totalorder %s114, %s117
      %p126 = scmp.eq.s32.totalorder %s17, 1
      %p127 = por %p125, %p126
      %p128 = scmp.ne.s32.totalorder %s117, %s118
      %p129 = scmp.eq.s32.totalorder %s17, 0
      %p130 = por %p128, %p129
      %p131 = scmp.ne.s32.totalorder %s117, %s118
      %p132 = scmp.eq.s32.totalorder %s18, 1
      %p133 = por %p131, %p132
      %p135 = scmp.ne.s32.totalorder %s118, %s134
      %p136 = scmp.eq.s32.totalorder %s18, 0
      %p137 = por %p135, %p136
      %p138 = scmp.le.s32.totalorder 1, %s12
      %p139 = scmp.lt.s32.totalorder %s12, 3
      %p140 = pnand %p138, %p139
      %p141 = pneg %p140
      // Predicated region
      $region9: #{tpu_custom_call.1} parent=5 // pred_check
        _
      $region10: #{tpu_custom_call.1} parent=5 // pred_check_branch
        %143 = sbr.rel (%p140) target = $region12
      $region11: #{tpu_custom_call.1} parent=5 // pred_region
        %s144 = ssub.s32 %s12, 1
        // Predicated region
        $region13: #{tpu_custom_call.1} parent=11 // pred_check
          %p145 = pneg %p78
        $region14: #{tpu_custom_call.1} parent=11 // pred_check_branch
          %147 = sbr.rel (%p145) target = $region16
        $region15: #{tpu_custom_call.1} parent=11 // pred_region
          %s148 = smul.u32 4, %s22
          %p149 = scmp.lt.s32.totalorder %s148, 3
          %s150 = scalar_select %p149, %s148, 3
          %s151 = smul.addr %s150, 4
          %s152 = scalar_lea.vmem %s1, %s151
          %s153 = smul.u32 4, %s22
        $region16: #{tpu_custom_call.1} parent=11 // pred_fallthru
          _
      $region12: #{tpu_custom_call.1} parent=5 // pred_fallthru
        _
      %p154 = scmp.lt.s32.totalorder %s12, 2
      // Predicated region
      $region17: #{tpu_custom_call.1} parent=5 // pred_check
        %p155 = pneg %p154
      $region18: #{tpu_custom_call.1} parent=5 // pred_check_branch
        %157 = sbr.rel (%p155) target = $region20
      $region19: #{tpu_custom_call.1} parent=5 // pred_region
        // Predicated region
        $region21: #{tpu_custom_call.1} parent=19 // pred_check
          %p158 = pneg %p46
        $region22: #{tpu_custom_call.1} parent=19 // pred_check_branch
          %160 = sbr.rel (%p158) target = $region24
        $region23: #{tpu_custom_call.1} parent=19 // pred_region
          %s161 = smul.u32 4, %s19
          %p162 = scmp.lt.s32.totalorder %s161, 7
          %s163 = scalar_select %p162, %s161, 7
          %p164 = scmp.lt.s32.totalorder %s20, 0
          %s165 = scalar_select %p164, %s20, 0
          %s166 = sadd.s32 %s165, %s163
          %s167 = smul.addr %s166, 4
          %s168 = scalar_lea.vmem %s0, %s167
          %s169 = smul.u32 4, %s19
        $region24: #{tpu_custom_call.1} parent=19 // pred_fallthru
          _
        // Predicated region
        $region25: #{tpu_custom_call.1} parent=19 // pred_check
          %p170 = pneg %p98
        $region26: #{tpu_custom_call.1} parent=19 // pred_check_branch
          %172 = sbr.rel (%p170) target = $region28
        $region27: #{tpu_custom_call.1} parent=19 // pred_region
          %s173 = smul.u32 4, %s19
          %p174 = scmp.lt.s32.totalorder %s173, 7
          %s175 = scalar_select %p174, %s173, 7
          %s176 = smul.addr %s175, 4
          %s177 = scalar_lea.vmem %s2, %s176
          %s178 = smul.u32 4, %s19
        $region28: #{tpu_custom_call.1} parent=19 // pred_fallthru
          _
      $region20: #{tpu_custom_call.1} parent=5 // pred_fallthru
        _
      %p179 = scmp.le.s32.totalorder 1, %s12
      %p180 = scmp.lt.s32.totalorder %s12, 3
      %p181 = pnand %p179, %p180
      %p182 = pneg %p181
      // Predicated region
      $region29: #{tpu_custom_call.1} parent=5 // pred_check
        _
      $region30: #{tpu_custom_call.1} parent=5 // pred_check_branch
        %184 = sbr.rel (%p181) target = $region32
      $region31: #{tpu_custom_call.1} parent=5 // pred_region
        %s185 = ssub.s32 %s12, 1
        %s186 = smul.u32 4, %s21
        %p187 = scmp.lt.s32.totalorder %s186, 7
        %s188 = scalar_select %p187, %s186, 7
        %p189 = scmp.lt.s32.totalorder %s22, 0
        %s190 = scalar_select %p189, %s22, 0
        %s191 = sadd.s32 %s190, %s188
        %s192 = smul.addr %s191, 4
        %s193 = scalar_lea.vmem %s0, %s192
        %p194 = pneg %p52
        %p195 = pneg %p49
        %s196 = smul.u32 4, %s22
        %p197 = scmp.lt.s32.totalorder %s196, 3
        %s198 = scalar_select %p197, %s196, 3
        %s199 = smul.addr %s198, 4
        %s200 = scalar_lea.vmem %s1, %s199
        %p201 = pneg %p78
        %p202 = pneg %p75
        %s203 = smul.u32 4, %s21
        %p204 = scmp.lt.s32.totalorder %s203, 7
        %s205 = scalar_select %p204, %s203, 7
        %s206 = smul.addr %s205, 4
        %s207 = scalar_lea.vmem %s2, %s206
        %p208 = pneg %p104
        %p209 = pneg %p101
        %p210 = pneg %p130
        %p211 = pneg %p127
        %s212 = sand.u32 %s117, 1
        %s213 = scalar_lea.sflag [#allocation4], %s212
        %s214 = sand.u32 %s117, 1
        %s215 = smul.addr %s214, 16
        %s216 = scalar_lea.vmem [#allocation3], %s215
        %s217 = smul.u32 4, %s21
        %p218 = scmp.lt.s32.totalorder %s217, 7
        %s219 = scalar_select %p218, %s217, 7
        %p220 = scmp.lt.s32.totalorder %s22, 0
        %s221 = scalar_select %p220, %s22, 0
        %s222 = sadd.s32 %s221, %s219
        %s223 = smul.addr %s222, 4
        %s224 = scalar_lea.vmem %s0, %s223
        %s225 = smul.u32 4, %s21
        %s226 = smul.u32 4, %s22
        %p227 = scmp.lt.s32.totalorder %s226, 3
        %s228 = scalar_select %p227, %s226, 3
        %s229 = smul.addr %s228, 4
        %s230 = scalar_lea.vmem %s1, %s229
        %s231 = smul.u32 4, %s22
        %s232 = smul.u32 4, %s21
        %p233 = scmp.lt.s32.totalorder %s232, 7
        %s234 = scalar_select %p233, %s232, 7
        %s235 = smul.addr %s234, 4
        %s236 = scalar_lea.vmem %s2, %s235
        %s237 = smul.u32 4, %s21
        %s238 = smul.u32 4, %s21
        %p240 = scmp.eq.s32.totalorder %s22, 0
        // Predicated region
        $region33: #{tpu_custom_call.1} parent=31 // pred_check
          %p241 = pneg %p240
        $region34: #{tpu_custom_call.1} parent=31 // pred_check_branch
          %243 = sbr.rel (%p241) target = $region36
        $region35: #{tpu_custom_call.1} parent=31 // pred_region
          %244 = vst [vmem:[#allocation2] sm:$0xff] 0.0
          %245 = vst [vmem:[#allocation2 + $0x8] sm:$0xff] 0.0
          %246 = vst [vmem:[#allocation2 + $0x10] sm:$0xff] 0.0
          %247 = vst [vmem:[#allocation2 + $0x18] sm:$0xff] 0.0
        $region36: #{tpu_custom_call.1} parent=31 // pred_fallthru
          _
        %v248 = vld [vmem:[#allocation2] sm:$0xff]
        %v249 = vld [vmem:[#allocation2 + $0x8] sm:$0xff]
        %v250 = vld [vmem:[#allocation2 + $0x10] sm:$0xff]
        %v251 = vld [vmem:[#allocation2 + $0x18] sm:$0xff]
        %v252 = vld [vmem:[%s224] sm:$0xf]
        %v253 = vld [vmem:[%s224 + $0x4] sm:$0xf]
        %v254 = vld [vmem:[%s224 + $0x8] sm:$0xf]
        %v255 = vld [vmem:[%s224 + $0xc] sm:$0xf]
        %v256 = vld [vmem:[%s230] sm:$0xf]
        %v257 = vld [vmem:[%s230 + $0x4] sm:$0xf]
        %v258 = vld [vmem:[%s230 + $0x8] sm:$0xf]
        %v259 = vld [vmem:[%s230 + $0xc] sm:$0xf]
        %v264 = vunpack.c.l.b16 %v252
        %v265 = vunpack.c.l.b16 %v253
        %v266 = vunpack.c.l.b16 %v254
        %v267 = vunpack.c.l.b16 %v255
        %v268 = vpack.c.b16 %v265, %v264
        %v269 = vpack.c.b16 %v267, %v266
        %v274 = vunpack.c.l.b16 %v256
        %v275 = vunpack.c.l.b16 %v257
        %v276 = vunpack.c.l.b16 %v258
        %v277 = vunpack.c.l.b16 %v259
        %v278 = vpack.c.b16 %v275, %v274
        %v279 = vpack.c.b16 %v277, %v276
        %vm282 = vcmask 261120
        %v284 = vsel %vm282, %v268, 0
        %v287 = vsel %vm282, %v269, 0
        %289 = vmatprep.subr.bf16.mxu0 0
        %290 = vmatpush1.bf16.msra.mxu0 0
        %291 = vmatprep.subr.bf16.mxu0 0
        %292 = vmatpush1.bf16.msra.mxu0 0
        %293 = vmatprep.subr.bf16.mxu0 0
        %294 = vmatpush1.bf16.msra.mxu0 0
        %295 = vmatprep.subr.bf16.mxu0 0
        %296 = vmatpush1.bf16.msra.mxu0 0
        %297 = vmatprep.subr.bf16.mxu0 0
        %298 = vmatpush1.bf16.msra.mxu0 0
        %299 = vmatprep.subr.bf16.mxu0 0
        %300 = vmatpush1.bf16.msra.mxu0 0
        %301 = vmatprep.subr.bf16.mxu0 0
        %302 = vmatpush1.bf16.msra.mxu0 %v279
        %303 = vmatprep.subr.bf16.mxu0 0
        %304 = vmatpush1.bf16.msra.mxu0 %v278
        %305 = vmatprep.subr.bf16.mxu0 0
        %306 = vmatpush2.bf16.msra.mxu0 0
        %307 = vmatprep.subr.bf16.mxu0 0
        %308 = vmatpush2.bf16.msra.mxu0 0
        %309 = vmatprep.subr.bf16.mxu0 0
        %310 = vmatpush2.bf16.msra.mxu0 0
        %311 = vmatprep.subr.bf16.mxu0 0
        %312 = vmatpush2.bf16.msra.mxu0 0
        %313 = vmatprep.subr.bf16.mxu0 0
        %314 = vmatpush2.bf16.msra.mxu0 0
        %315 = vmatprep.subr.bf16.mxu0 0
        %316 = vmatpush2.bf16.msra.mxu0 0
        %317 = vmatprep.subr.bf16.mxu0 0
        %318 = vmatpush2.bf16.msra.mxu0 0
        %319 = vmatprep.subr.bf16.mxu0 0
        %320 = vmatpush2.bf16.msra.mxu0 0
        %321 = vmatprep.mubr.bf16.mxu0 0
        %322 = vmatmul.mubr.bf16.gmra.mxu0 %v284
        %v323 = vpop.f32.mrf.mxu0
        %v324 = vadd.f32 0.0, %v323
        %v325 = vpop.f32.mrf.mxu0
        %v326 = vpop.f32.mrf.mxu0
        %v327 = vadd.f32 0.0, %v326
        %v328 = vpop.f32.mrf.mxu0
        %329 = vmatprep.mubr.bf16.mxu0 0
        %330 = vmatmul.mubr.bf16.gmra.mxu0 %v287
        %v331 = vpop.f32.mrf.mxu0
        %v332 = vadd.f32 0.0, %v331
        %v333 = vpop.f32.mrf.mxu0
        %v334 = vpop.f32.mrf.mxu0
        %v335 = vadd.f32 0.0, %v334
        %v336 = vpop.f32.mrf.mxu0
        %337 = vdwg.mxu0
        %v338 = vadd.f32 %v248, %v324
        %v339 = vadd.f32 %v249, %v327
        %v340 = vadd.f32 %v250, %v332
        %v341 = vadd.f32 %v251, %v335
        %342 = vst [vmem:[#allocation2] sm:$0xff] %v338
        %343 = vst [vmem:[#allocation2 + $0x8] sm:$0xff] %v339
        %344 = vst [vmem:[#allocation2 + $0x10] sm:$0xff] %v340
        %345 = vst [vmem:[#allocation2 + $0x18] sm:$0xff] %v341
        // Predicated region
        $region37: #{tpu_custom_call.1} parent=31 // pred_check
          %p346 = pneg %p240
        $region38: #{tpu_custom_call.1} parent=31 // pred_check_branch
          %348 = sbr.rel (%p346) target = $region40
        $region39: #{tpu_custom_call.1} parent=31 // pred_region
          %v349 = vld [vmem:[#allocation2] sm:$0xff]
          %v350 = vld [vmem:[#allocation2 + $0x8] sm:$0xff]
          %v351 = vld [vmem:[#allocation2 + $0x10] sm:$0xff]
          %v352 = vld [vmem:[#allocation2 + $0x18] sm:$0xff]
          %v353 = vld [vmem:[%s236] sm:$0xf]
          %v354 = vld [vmem:[%s236 + $0x4] sm:$0xf]
          %v355 = vld [vmem:[%s236 + $0x8] sm:$0xf]
          %v356 = vld [vmem:[%s236 + $0xc] sm:$0xf]
          %v357 = vunpack.c.l.bf16 %v353
          %v358 = vunpack.c.l.bf16 %v354
          %v359 = vunpack.c.l.bf16 %v355
          %v360 = vunpack.c.l.bf16 %v356
          %v361 = vadd.f32 %v349, %v357
          %v362 = vadd.f32 %v350, %v358
          %v363 = vadd.f32 %v351, %v359
          %v364 = vadd.f32 %v352, %v360
          %v365 = vpack.c.bf16 %v362, %v361
          %v366 = vpack.c.bf16 %v364, %v363
          %v369 = vunpack.c.l.b16 %v365
          %v370 = vunpack.c.h.b16 %v365
          %v371 = vunpack.c.l.b16 %v366
          %v372 = vunpack.c.h.b16 %v366
          %v373 = vpack.c.b16 %v369, %v369
          %v374 = vpack.c.b16 %v370, %v370
          %v375 = vpack.c.b16 %v371, %v371
          %v376 = vpack.c.b16 %v372, %v372
          %381 = vst [vmem:[%s216] sm:$0xf] %v373
          %382 = vst [vmem:[%s216 + $0x4] sm:$0xf] %v374
          %383 = vst [vmem:[%s216 + $0x8] sm:$0xf] %v375
          %384 = vst [vmem:[%s216 + $0xc] sm:$0xf] %v376
        $region40: #{tpu_custom_call.1} parent=31 // pred_fallthru
          _
        %s385 = sand.u32 %s117, 1
        %s386 = scalar_lea.sflag [#allocation4], %s385
        %s387 = sand.u32 %s117, 1
        %s388 = smul.addr %s387, 16
        %s389 = scalar_lea.vmem [#allocation3], %s388
        // Predicated region
        $region41: #{tpu_custom_call.1} parent=31 // pred_check
          %p390 = pneg %p127
        $region42: #{tpu_custom_call.1} parent=31 // pred_check_branch
          %392 = sbr.rel (%p390) target = $region44
        $region43: #{tpu_custom_call.1} parent=31 // pred_region
          %s393 = smul.u32 4, %s21
          %s395 = ssub.s32 256, 256
          %396 = vsyncadd %s386, %s395
          %s397 = smul.addr %s393, 64
          %s398 = scalar_lea.hbm %s3, %s397
          %s399 = sshll.u32 %s389, 4
          %s400 = int_to_ptr.vmem [resolvable:$true] %s399
          %405 = dma.vmem_to_hbm [thread:$0]  %s400, 256, %s398, %s386, 64, 64, 4
        $region44: #{tpu_custom_call.1} parent=31 // pred_fallthru
          _
      $region32: #{tpu_custom_call.1} parent=5 // pred_fallthru
        _
      %p406 = scmp.le.s32.totalorder 2, %s12
      // Predicated region
      $region45: #{tpu_custom_call.1} parent=5 // pred_check
        %p407 = pneg %p406
      $region46: #{tpu_custom_call.1} parent=5 // pred_check_branch
        %409 = sbr.rel (%p407) target = $region48
      $region47: #{tpu_custom_call.1} parent=5 // pred_region
        %s410 = ssub.s32 %s12, 2
        // Predicated region
        $region49: #{tpu_custom_call.1} parent=47 // pred_check
          %p411 = pneg %p133
        $region50: #{tpu_custom_call.1} parent=47 // pred_check_branch
          %413 = sbr.rel (%p411) target = $region52
        $region51: #{tpu_custom_call.1} parent=47 // pred_region
          %s414 = sand.u32 %s118, 1
          %s415 = scalar_lea.sflag [#allocation4], %s414
          %s416 = sand.u32 %s118, 1
          %s417 = smul.addr %s416, 16
          %s418 = scalar_lea.vmem [#allocation3], %s417
          %419 = dma.done %s415, 256
        $region52: #{tpu_custom_call.1} parent=47 // pred_fallthru
          _
      $region48: #{tpu_custom_call.1} parent=5 // pred_fallthru
        _
    $region6: #{tpu_custom_call.1} parent=1 // loop_footer
      %s16 = sadd.s32 1, %s12
    $region7: #{tpu_custom_call.1} parent=1 // loop_footer_branch
      %11 = sbr.rel target = $region3
    $region8: #{tpu_custom_call.1} parent=1 // loop_exit
      _
    %420 = vsyncpa [#allocation4], 1
    %s421 = scalar_lea.sflag [#allocation4], 1
    %422 = vsyncpa %s421, 1

</llo_original>
